<compile_context>
chip_gen: v5e
topology: v5e:2x2
jax: 0.10.0
libtpu: 0.0.40
codegen_flags: <defaults>
</compile_context>

<pallas_src>
import functools

import jax
import jax.numpy as jnp
from jax.experimental import pallas as pl
from jax.experimental.pallas import tpu as pltpu

INPUT_SIZE = 294
HIDDEN = 400
OUTPUT_SIZE = 20

# (8,128)-aligned padded sizes for the matmul output dims (zero padding is exact).
H_PAD = 512   # 400 -> 4*128
N_PAD = 128   # 20  -> 1*128


def _round_up(x, m):
    return (x + m - 1) // m * m


def _default_bf16_epilogue():
    """bf16 bias/ReLU epilogue only on chips with a bf16 VPU (v6e / v7x)."""
    try:
        kind = jax.devices()[0].device_kind.lower()
    except Exception:
        return False
    return any(tag in kind for tag in ("v6", "v7", "7x"))


def _pick_tm(batch, block_m):
    """Batch-tile size: single tile for tiny batches, otherwise >= 2 roughly even
    tiles (v7x megacore) capped at block_m. Always a multiple of 8."""
    b8 = _round_up(max(batch, 1), 8)
    if b8 <= 16:
        return b8
    return max(8, min(block_m, _round_up(pl.cdiv(b8, 2), 8)))


# ---------------------------------------------------------------------------
# Kernels
# ---------------------------------------------------------------------------
def mlp_kernel_bf16_epilogue(x_ref, w1_ref, b1_ref, w2_ref, b2_ref, o_ref):
    # In-kernel f32 -> bf16 cast of the streamed x tile (rides the VPU for free).
    x = x_ref[...].astype(jnp.bfloat16)
    h = jnp.dot(x, w1_ref[...], preferred_element_type=jnp.float32)
    # bf16 bias + ReLU epilogue (v6e/v7x): halves VALU bundles, feeds dot2 directly.
    h = jnp.maximum(h.astype(jnp.bfloat16) + b1_ref[...], 0.0)
    out = jnp.dot(h, w2_ref[...], preferred_element_type=jnp.float32)
    o_ref[...] = (out + b2_ref[...]).astype(o_ref.dtype)


def mlp_kernel_f32_epilogue(x_ref, w1_ref, b1_ref, w2_ref, b2_ref, o_ref):
    # v5e-safe path: no bf16 VALU there, keep the elementwise epilogue in f32.
    x = x_ref[...].astype(jnp.bfloat16)
    h = jnp.dot(x, w1_ref[...], preferred_element_type=jnp.float32)
    h = jnp.maximum(h + b1_ref[...], 0.0)
    out = jnp.dot(h.astype(jnp.bfloat16), w2_ref[...],
                  preferred_element_type=jnp.float32)
    o_ref[...] = (out + b2_ref[...]).astype(o_ref.dtype)


# ---------------------------------------------------------------------------
# One-time parameter preparation (hoisted out of the forward path)
# ---------------------------------------------------------------------------
def prepare_params(w1, b1, w2, b2, *, bf16_epilogue=None):
    """Pad output dims to lane-aligned sizes and cast weights to bf16, once.

    Weights are stored (in_features, out_features), i.e. transposed relative to
    PyTorch's nn.Linear weight, so the kernel computes x @ W + b.
    """
    if bf16_epilogue is None:
        bf16_epilogue = _default_bf16_epilogue()
    epi_dtype = jnp.bfloat16 if bf16_epilogue else jnp.float32

    w1_p = jnp.zeros((INPUT_SIZE, H_PAD), jnp.bfloat16).at[:, :HIDDEN].set(
        w1.astype(jnp.bfloat16))
    b1_p = jnp.zeros((1, H_PAD), epi_dtype).at[:, :HIDDEN].set(
        b1.reshape(1, HIDDEN).astype(epi_dtype))
    w2_p = jnp.zeros((H_PAD, N_PAD), jnp.bfloat16).at[:HIDDEN, :OUTPUT_SIZE].set(
        w2.astype(jnp.bfloat16))
    b2_p = jnp.zeros((1, N_PAD), jnp.float32).at[:, :OUTPUT_SIZE].set(
        b2.reshape(1, OUTPUT_SIZE).astype(jnp.float32))
    return (w1_p, b1_p, w2_p, b2_p), bf16_epilogue


# ---------------------------------------------------------------------------
# Forward
# ---------------------------------------------------------------------------
@functools.partial(jax.jit, static_argnames=("bf16_epilogue", "block_m"))
def neural_network_forward(x, w1_p, b1_p, w2_p, b2_p, *, bf16_epilogue, block_m=512):
    """x: (B, 294) f32 (passed unpadded); params from prepare_params(). Returns (B, 20) f32."""
    B = x.shape[0]
    tm = _pick_tm(B, block_m)
    grid = (pl.cdiv(B, tm),)   # boundary tiles handled by Pallas masking (rows independent)

    kernel = mlp_kernel_bf16_epilogue if bf16_epilogue else mlp_kernel_f32_epilogue

    out_p = pl.pallas_call(
        kernel,
        out_shape=jax.ShapeDtypeStruct((B, N_PAD), jnp.float32),
        grid_spec=pltpu.PrefetchScalarGridSpec(
            num_scalar_prefetch=0,
            grid=grid,
            in_specs=[
                # x streamed per batch tile, full (unpadded) 294-wide last dim.
                pl.BlockSpec((tm, INPUT_SIZE), lambda i: (i, 0)),
                # Weights / biases VMEM-resident via constant index maps.
                pl.BlockSpec((INPUT_SIZE, H_PAD), lambda i: (0, 0)),
                pl.BlockSpec((1, H_PAD), lambda i: (0, 0)),
                pl.BlockSpec((H_PAD, N_PAD), lambda i: (0, 0)),
                pl.BlockSpec((1, N_PAD), lambda i: (0, 0)),
            ],
            out_specs=pl.BlockSpec((tm, N_PAD), lambda i: (i, 0)),
        ),
        compiler_params=pltpu.CompilerParams(
            dimension_semantics=("parallel",)),   # batch tiles shard across TCs on v7x
    )(x, w1_p, b1_p, w2_p, b2_p)

    # Slice padded output lanes back to the logical 20 features.
    return out_p[:, :OUTPUT_SIZE]


# ---------------------------------------------------------------------------
# Reference + init
# ---------------------------------------------------------------------------
def init_params(key):
    """PyTorch-style Linear init: U(-1/sqrt(fan_in), 1/sqrt(fan_in)); weights (in, out)."""
    k1, k2, k3, k4 = jax.random.split(key, 4)
    bound1 = 1.0 / jnp.sqrt(jnp.float32(INPUT_SIZE))
    bound2 = 1.0 / jnp.sqrt(jnp.float32(HIDDEN))
    w1 = jax.random.uniform(k1, (INPUT_SIZE, HIDDEN), jnp.float32, -bound1, bound1)
    b1 = jax.random.uniform(k2, (HIDDEN,), jnp.float32, -bound1, bound1)
    w2 = jax.random.uniform(k3, (HIDDEN, OUTPUT_SIZE), jnp.float32, -bound2, bound2)
    b2 = jax.random.uniform(k4, (OUTPUT_SIZE,), jnp.float32, -bound2, bound2)
    return w1, b1, w2, b2


def reference_forward(x, w1, b1, w2, b2):
    h = jnp.maximum(x @ w1 + b1.reshape(1, -1), 0.0)
    return h @ w2 + b2.reshape(1, -1)


if __name__ == "__main__":
    key = jax.random.PRNGKey(0)
    kp, kx = jax.random.split(key)
    w1, b1, w2, b2 = init_params(kp)

    # One-time parameter prep (pad + bf16 cast), hoisted out of the forward path.
    (w1_p, b1_p, w2_p, b2_p), use_bf16_epi = prepare_params(w1, b1, w2, b2)

    # Small batch (single tile, latency path).
    B = 8
    x = jax.random.normal(kx, (B, INPUT_SIZE), jnp.float32)
    out = jax.block_until_ready(
        neural_network_forward(x, w1_p, b1_p, w2_p, b2_p, bf16_epilogue=use_bf16_epi))
    ref = reference_forward(x, w1, b1, w2, b2)
    assert out.shape == (B, OUTPUT_SIZE)
    # bf16 MXU inputs with f32 accumulation -> loosened tolerance vs f32 reference.
    assert jnp.allclose(out, ref, atol=5e-2, rtol=5e-2), float(
        jnp.max(jnp.abs(out - ref)))

    # Larger, non-divisible batch: exercises the 2-tile parallel grid + boundary masking.
    B2 = 300
    x2 = jax.random.normal(jax.random.PRNGKey(1), (B2, INPUT_SIZE), jnp.float32)
    out2 = jax.block_until_ready(
        neural_network_forward(x2, w1_p, b1_p, w2_p, b2_p, bf16_epilogue=use_bf16_epi))
    ref2 = reference_forward(x2, w1, b1, w2, b2)
    assert out2.shape == (B2, OUTPUT_SIZE)
    assert jnp.allclose(out2, ref2, atol=5e-2, rtol=5e-2), float(
        jnp.max(jnp.abs(out2 - ref2)))

    print("KERNEL_OK")
</pallas_src>

<mosaic_0001>
module attributes {stable_mosaic.version = 11 : i64} {
  func.func @mlp_kernel_f32_epilogue(%arg0: i32, %arg1: memref<8x294xf32, #tpu.memory_space<vmem>>, %arg2: memref<294x512xbf16, #tpu.memory_space<vmem>>, %arg3: memref<1x512xf32, #tpu.memory_space<vmem>>, %arg4: memref<512x128xbf16, #tpu.memory_space<vmem>>, %arg5: memref<1x128xf32, #tpu.memory_space<vmem>>, %arg6: memref<8x128xf32, #tpu.memory_space<vmem>>) attributes {dimension_semantics = [#tpu.dimension_semantics<parallel>], iteration_bounds = array<i64: 1>, scalar_prefetch = 0 : i64, scratch_operands = 0 : i64, tpu.core_type = #tpu.core_type<tc>, window_params = [{transform_indices = @transform_0, window_bounds = array<i64: 8, 294>}, {pipeline_mode = #tpu.pipeline_mode<synchronous>, transform_indices = @transform_1, window_bounds = array<i64: 294, 512>}, {pipeline_mode = #tpu.pipeline_mode<synchronous>, transform_indices = @transform_2, window_bounds = array<i64: 1, 512>}, {pipeline_mode = #tpu.pipeline_mode<synchronous>, transform_indices = @transform_3, window_bounds = array<i64: 512, 128>}, {pipeline_mode = #tpu.pipeline_mode<synchronous>, transform_indices = @transform_4, window_bounds = array<i64: 1, 128>}, {transform_indices = @transform_5, window_bounds = array<i64: 8, 128>}]} {
    %c0 = arith.constant 0 : index
    %c0_0 = arith.constant 0 : index
    %0 = vector.load %arg1[%c0, %c0_0] : memref<8x294xf32, #tpu.memory_space<vmem>>, vector<8x294xf32>
    %1 = arith.truncf %0 : vector<8x294xf32> to vector<8x294xbf16>
    %c0_1 = arith.constant 0 : index
    %c0_2 = arith.constant 0 : index
    %2 = vector.load %arg2[%c0_1, %c0_2] : memref<294x512xbf16, #tpu.memory_space<vmem>>, vector<294x512xbf16>
    %cst = arith.constant dense<0.000000e+00> : vector<8x512xf32>
    %3 = tpu.matmul %1, %2, %cst {dimension_numbers = #tpu.dot_dimension_numbers<[1], [0], [0], [1], [0, 0, 1, 1], [], []>} : vector<8x294xbf16>, vector<294x512xbf16>, vector<8x512xf32> -> vector<8x512xf32>
    %c0_3 = arith.constant 0 : index
    %c0_4 = arith.constant 0 : index
    %4 = vector.load %arg3[%c0_3, %c0_4] : memref<1x512xf32, #tpu.memory_space<vmem>>, vector<1x512xf32>
    %5 = vector.broadcast %4 : vector<1x512xf32> to vector<8x512xf32>
    %6 = arith.addf %3, %5 : vector<8x512xf32>
    %cst_5 = arith.constant 0.000000e+00 : f32
    %7 = vector.broadcast %cst_5 : f32 to vector<8x512xf32>
    %8 = arith.maximumf %6, %7 : vector<8x512xf32>
    %9 = arith.truncf %8 : vector<8x512xf32> to vector<8x512xbf16>
    %c0_6 = arith.constant 0 : index
    %c0_7 = arith.constant 0 : index
    %10 = vector.load %arg4[%c0_6, %c0_7] : memref<512x128xbf16, #tpu.memory_space<vmem>>, vector<512x128xbf16>
    %cst_8 = arith.constant dense<0.000000e+00> : vector<8x128xf32>
    %11 = tpu.matmul %9, %10, %cst_8 {dimension_numbers = #tpu.dot_dimension_numbers<[1], [0], [0], [1], [0, 0, 1, 1], [], []>} : vector<8x512xbf16>, vector<512x128xbf16>, vector<8x128xf32> -> vector<8x128xf32>
    %c0_9 = arith.constant 0 : index
    %c0_10 = arith.constant 0 : index
    %12 = vector.load %arg5[%c0_9, %c0_10] : memref<1x128xf32, #tpu.memory_space<vmem>>, vector<1x128xf32>
    %13 = vector.broadcast %12 : vector<1x128xf32> to vector<8x128xf32>
    %14 = arith.addf %11, %13 : vector<8x128xf32>
    %c0_11 = arith.constant 0 : index
    %c0_12 = arith.constant 0 : index
    %15 = vector.load %arg6[%c0_11, %c0_12] : memref<8x128xf32, #tpu.memory_space<vmem>>, vector<8x128xf32>
    tpu.vector_store %arg6[%c0_11, %c0_12], %14 {strides = array<i32>} : memref<8x128xf32, #tpu.memory_space<vmem>>, vector<8x128xf32>,
    return
  }
  func.func @transform_0(%arg0: i32) -> (i32, i32) {
    %c0_i32 = arith.constant 0 : i32
    %c0_i32_0 = arith.constant 0 : i32
    return %arg0, %c0_i32 : i32, i32
  }
  func.func @transform_1(%arg0: i32) -> (i32, i32) {
    %c0_i32 = arith.constant 0 : i32
    %c0_i32_0 = arith.constant 0 : i32
    %c0_i32_1 = arith.constant 0 : i32
    return %c0_i32, %c0_i32_0 : i32, i32
  }
  func.func @transform_2(%arg0: i32) -> (i32, i32) {
    %c0_i32 = arith.constant 0 : i32
    %c0_i32_0 = arith.constant 0 : i32
    %c0_i32_1 = arith.constant 0 : i32
    return %c0_i32, %c0_i32_0 : i32, i32
  }
  func.func @transform_3(%arg0: i32) -> (i32, i32) {
    %c0_i32 = arith.constant 0 : i32
    %c0_i32_0 = arith.constant 0 : i32
    %c0_i32_1 = arith.constant 0 : i32
    return %c0_i32, %c0_i32_0 : i32, i32
  }
  func.func @transform_4(%arg0: i32) -> (i32, i32) {
    %c0_i32 = arith.constant 0 : i32
    %c0_i32_0 = arith.constant 0 : i32
    %c0_i32_1 = arith.constant 0 : i32
    return %c0_i32, %c0_i32_0 : i32, i32
  }
  func.func @transform_5(%arg0: i32) -> (i32, i32) {
    %c0_i32 = arith.constant 0 : i32
    %c0_i32_0 = arith.constant 0 : i32
    return %arg0, %c0_i32 : i32, i32
  }
}

</mosaic_0001>

<llo_original>
// kernel: neural_network_forward.1
$region0: #{neural_network_forward.1}
  #allocation0 [shape = 'u32[]', space=smem, size = 0x4, offset = 0x4, fixed_abs, tag = 'smem constant byte address 0x4 - core index']
  #allocation1 [shape = 'u32[72,128]{1,0:T(1,128)}', space=vmem, size = 0x9000, scoped, tag = 'internal scratch']
  %s0 = inlined_call_operand.hbm [shape: f32[8,294], index: 0, kind: input, shape index: {}]
  %s1 = inlined_call_operand.hbm [shape: bf16[294,512], index: 1, kind: input, shape index: {}]
  %s2 = inlined_call_operand.hbm [shape: f32[1,512], index: 2, kind: input, shape index: {}]
  %s3 = inlined_call_operand.hbm [shape: bf16[512,128], index: 3, kind: input, shape index: {}]
  %s4 = inlined_call_operand.vmem [shape: f32[1,128], index: 4, kind: input, shape index: {}]
  %s5 = inlined_call_operand.hbm [shape: f32[8,128], index: 5, kind: output, shape index: {}]
  %s6 = sld [smem:[#allocation0]]
  $region46: #{neural_network_forward.1} parent=0
    _
  %s8 = ssub.s32 1, %s6
  %s9 = scalar_select 0, %s8, %s6
  $region1: #{neural_network_forward.1} parent=0
    #allocation2 [shape = 'u8[12288]{0}', space=vmem, size = 0x3000, scoped, tag = 'input window, operand 0, single buffered']
    #allocation3 [shape = 's32[1]{0}', space=sflag, size = 0x4, scoped, tag = 'scoped memory for neural_network_forward.1']
    #allocation4 [shape = 's32[1]{0}', space=sflag, size = 0x4, scoped, tag = 'scoped memory for neural_network_forward.1']
    #allocation5 [shape = 'u8[303104]{0}', space=vmem, size = 0x4a000, scoped, tag = 'input window, operand 1, single buffered']
    #allocation6 [shape = 's32[1]{0}', space=sflag, size = 0x4, scoped, tag = 'scoped memory for neural_network_forward.1']
    #allocation7 [shape = 'u8[2048]{0}', space=vmem, size = 0x800, scoped, tag = 'input window, operand 2, single buffered']
    #allocation8 [shape = 'u8[131072]{0}', space=vmem, size = 0x20000, scoped, tag = 'input window, operand 3, single buffered']
    #allocation9 [shape = 's32[1]{0}', space=sflag, size = 0x4, scoped, tag = 'scoped memory for neural_network_forward.1']
    #allocation10 [shape = 'u8[4096]{0}', space=vmem, size = 0x1000, scoped, tag = 'output window, operand 0, single buffered']
    %10 = vsyncpa [#allocation3], 0
    %11 = vsyncpa [#allocation6], 0
    %12 = vsyncpa [#allocation9], 0
    %13 = vsyncpa [#allocation4], 0
    // Predicated region
    $region2: #{neural_network_forward.1} parent=1 // pred_check
      _
    $region3: #{neural_network_forward.1} parent=1 // pred_check_branch
      %15 = sbr.rel (0) target = $region5
    $region4: #{neural_network_forward.1} parent=1 // pred_region
      %17 = vsyncadd [#allocation3], 0
      %s19 = sshll.u32 %s0, 4
      %s20 = int_to_ptr.hbm [resolvable:$true] %s19
      %s21 = sshll.u32 [#allocation2], 4
      %s22 = int_to_ptr.vmem [resolvable:$true] %s21
      %24 = dma.hbm_to_vmem [thread:$0]  %s20, 384, %s22, [#allocation3]
    $region5: #{neural_network_forward.1} parent=1 // pred_fallthru
      _
    // Predicated region
    $region6: #{neural_network_forward.1} parent=1 // pred_check
      _
    $region7: #{neural_network_forward.1} parent=1 // pred_check_branch
      %26 = sbr.rel (0) target = $region9
    $region8: #{neural_network_forward.1} parent=1 // pred_region
      %28 = vsyncadd [#allocation6], 0
      %s29 = sshll.u32 %s1, 4
      %s30 = int_to_ptr.hbm [resolvable:$true] %s29
      %s31 = sshll.u32 [#allocation5], 4
      %s32 = int_to_ptr.vmem [resolvable:$true] %s31
      %37 = dma.hbm_to_vmem [thread:$0]  %s30, 9472, %s32, [#allocation6], 256, 256, 16
    $region9: #{neural_network_forward.1} parent=1 // pred_fallthru
      _
    // Predicated region
    $region10: #{neural_network_forward.1} parent=1 // pred_check
      _
    $region11: #{neural_network_forward.1} parent=1 // pred_check_branch
      %39 = sbr.rel (0) target = $region13
    $region12: #{neural_network_forward.1} parent=1 // pred_region
      %41 = vsyncadd [#allocation6], 0
      %s43 = sshll.u32 %s2, 4
      %s44 = int_to_ptr.hbm [resolvable:$true] %s43
      %s45 = sshll.u32 [#allocation7], 4
      %s46 = int_to_ptr.vmem [resolvable:$true] %s45
      %48 = dma.hbm_to_vmem [thread:$0]  %s44, 64, %s46, [#allocation6]
    $region13: #{neural_network_forward.1} parent=1 // pred_fallthru
      _
    // Predicated region
    $region14: #{neural_network_forward.1} parent=1 // pred_check
      _
    $region15: #{neural_network_forward.1} parent=1 // pred_check_branch
      %50 = sbr.rel (0) target = $region17
    $region16: #{neural_network_forward.1} parent=1 // pred_region
      %52 = vsyncadd [#allocation9], 0
      %s53 = sshll.u32 %s3, 4
      %s54 = int_to_ptr.hbm [resolvable:$true] %s53
      %s55 = sshll.u32 [#allocation8], 4
      %s56 = int_to_ptr.vmem [resolvable:$true] %s55
      %61 = dma.hbm_to_vmem [thread:$0]  %s54, 4096, %s56, [#allocation9], 64, 64, 4
    $region17: #{neural_network_forward.1} parent=1 // pred_fallthru
      _
    // Predicated region
    $region18: #{neural_network_forward.1} parent=1 // pred_check
      _
    $region19: #{neural_network_forward.1} parent=1 // pred_check_branch
      %63 = sbr.rel (0) target = $region21
    $region20: #{neural_network_forward.1} parent=1 // pred_region
      _
    $region21: #{neural_network_forward.1} parent=1 // pred_fallthru
      _
    // Predicated region
    $region22: #{neural_network_forward.1} parent=1 // pred_check
      _
    $region23: #{neural_network_forward.1} parent=1 // pred_check_branch
      %65 = sbr.rel (0) target = $region25
    $region24: #{neural_network_forward.1} parent=1 // pred_region
      %67 = dma.done [#allocation3], 384
    $region25: #{neural_network_forward.1} parent=1 // pred_fallthru
      _
    // Predicated region
    $region26: #{neural_network_forward.1} parent=1 // pred_check
      _
    $region27: #{neural_network_forward.1} parent=1 // pred_check_branch
      %69 = sbr.rel (0) target = $region29
    $region28: #{neural_network_forward.1} parent=1 // pred_region
      %71 = dma.done [#allocation6], 9472
    $region29: #{neural_network_forward.1} parent=1 // pred_fallthru
      _
    // Predicated region
    $region30: #{neural_network_forward.1} parent=1 // pred_check
      _
    $region31: #{neural_network_forward.1} parent=1 // pred_check_branch
      %73 = sbr.rel (0) target = $region33
    $region32: #{neural_network_forward.1} parent=1 // pred_region
      %75 = dma.done [#allocation6], 64
    $region33: #{neural_network_forward.1} parent=1 // pred_fallthru
      _
    // Predicated region
    $region34: #{neural_network_forward.1} parent=1 // pred_check
      _
    $region35: #{neural_network_forward.1} parent=1 // pred_check_branch
      %77 = sbr.rel (0) target = $region37
    $region36: #{neural_network_forward.1} parent=1 // pred_region
      %79 = dma.done [#allocation9], 4096
    $region37: #{neural_network_forward.1} parent=1 // pred_fallthru
      _
    %v81 = vld [vmem:[#allocation2] sm:$0xff]
    %v82 = vld [vmem:[#allocation2 + $0x8] sm:$0xff]
    %v83 = vld [vmem:[#allocation2 + $0x10] sm:$0xff]
    %v84 = vpack.c.bf16 %v81, %v81
    %v85 = vpack.c.bf16 %v82, %v82
    %v86 = vpack.c.bf16 %v83, %v83
    %v87 = vld [vmem:[#allocation5] sm:$0xff]
    %v88 = vld [vmem:[#allocation5 + $0x8] sm:$0xff]
    %v89 = vld [vmem:[#allocation5 + $0x10] sm:$0xff]
    %v90 = vld [vmem:[#allocation5 + $0x18] sm:$0xff]
    %v91 = vld [vmem:[#allocation5 + $0x20] sm:$0xff]
    %v92 = vld [vmem:[#allocation5 + $0x28] sm:$0xff]
    %v93 = vld [vmem:[#allocation5 + $0x30] sm:$0xff]
    %v94 = vld [vmem:[#allocation5 + $0x38] sm:$0xff]
    %v95 = vld [vmem:[#allocation5 + $0x40] sm:$0xff]
    %v96 = vld [vmem:[#allocation5 + $0x48] sm:$0xff]
    %v97 = vld [vmem:[#allocation5 + $0x50] sm:$0xff]
    %v98 = vld [vmem:[#allocation5 + $0x58] sm:$0xff]
    %v99 = vld [vmem:[#allocation5 + $0x60] sm:$0xff]
    %v100 = vld [vmem:[#allocation5 + $0x68] sm:$0xff]
    %v101 = vld [vmem:[#allocation5 + $0x70] sm:$0xff]
    %v102 = vld [vmem:[#allocation5 + $0x78] sm:$0xff]
    %v103 = vld [vmem:[#allocation5 + $0x80] sm:$0xff]
    %v104 = vld [vmem:[#allocation5 + $0x88] sm:$0xff]
    %v105 = vld [vmem:[#allocation5 + $0x90] sm:$0xff]
    %v106 = vld [vmem:[#allocation5 + $0x98] sm:$0xff]
    %v107 = vld [vmem:[#allocation5 + $0xa0] sm:$0xff]
    %v108 = vld [vmem:[#allocation5 + $0xa8] sm:$0xff]
    %v109 = vld [vmem:[#allocation5 + $0xb0] sm:$0xff]
    %v110 = vld [vmem:[#allocation5 + $0xb8] sm:$0xff]
    %v111 = vld [vmem:[#allocation5 + $0xc0] sm:$0xff]
    %v112 = vld [vmem:[#allocation5 + $0xc8] sm:$0xff]
    %v113 = vld [vmem:[#allocation5 + $0xd0] sm:$0xff]
    %v114 = vld [vmem:[#allocation5 + $0xd8] sm:$0xff]
    %v115 = vld [vmem:[#allocation5 + $0xe0] sm:$0xff]
    %v116 = vld [vmem:[#allocation5 + $0xe8] sm:$0xff]
    %v117 = vld [vmem:[#allocation5 + $0xf0] sm:$0xff]
    %v118 = vld [vmem:[#allocation5 + $0xf8] sm:$0xff]
    %v119 = vld [vmem:[#allocation5 + $0x100] sm:$0xff]
    %v120 = vld [vmem:[#allocation5 + $0x108] sm:$0xff]
    %v121 = vld [vmem:[#allocation5 + $0x110] sm:$0xff]
    %v122 = vld [vmem:[#allocation5 + $0x118] sm:$0xff]
    %v123 = vld [vmem:[#allocation5 + $0x120] sm:$0xff]
    %v124 = vld [vmem:[#allocation5 + $0x128] sm:$0xff]
    %v125 = vld [vmem:[#allocation5 + $0x130] sm:$0xff]
    %v126 = vld [vmem:[#allocation5 + $0x138] sm:$0xff]
    %v127 = vld [vmem:[#allocation5 + $0x140] sm:$0xff]
    %v128 = vld [vmem:[#allocation5 + $0x148] sm:$0xff]
    %v129 = vld [vmem:[#allocation5 + $0x150] sm:$0xff]
    %v130 = vld [vmem:[#allocation5 + $0x158] sm:$0xff]
    %v131 = vld [vmem:[#allocation5 + $0x160] sm:$0xff]
    %v132 = vld [vmem:[#allocation5 + $0x168] sm:$0xff]
    %v133 = vld [vmem:[#allocation5 + $0x170] sm:$0xff]
    %v134 = vld [vmem:[#allocation5 + $0x178] sm:$0xff]
    %v135 = vld [vmem:[#allocation5 + $0x180] sm:$0xff]
    %v136 = vld [vmem:[#allocation5 + $0x188] sm:$0xff]
    %v137 = vld [vmem:[#allocation5 + $0x190] sm:$0xff]
    %v138 = vld [vmem:[#allocation5 + $0x198] sm:$0xff]
    %v139 = vld [vmem:[#allocation5 + $0x1a0] sm:$0xff]
    %v140 = vld [vmem:[#allocation5 + $0x1a8] sm:$0xff]
    %v141 = vld [vmem:[#allocation5 + $0x1b0] sm:$0xff]
    %v142 = vld [vmem:[#allocation5 + $0x1b8] sm:$0xff]
    %v143 = vld [vmem:[#allocation5 + $0x1c0] sm:$0xff]
    %v144 = vld [vmem:[#allocation5 + $0x1c8] sm:$0xff]
    %v145 = vld [vmem:[#allocation5 + $0x1d0] sm:$0xff]
    %v146 = vld [vmem:[#allocation5 + $0x1d8] sm:$0xff]
    %v147 = vld [vmem:[#allocation5 + $0x1e0] sm:$0xff]
    %v148 = vld [vmem:[#allocation5 + $0x1e8] sm:$0xff]
    %v149 = vld [vmem:[#allocation5 + $0x1f0] sm:$0xff]
    %v150 = vld [vmem:[#allocation5 + $0x1f8] sm:$0xff]
    %v151 = vld [vmem:[#allocation5 + $0x200] sm:$0xff]
    %v152 = vld [vmem:[#allocation5 + $0x208] sm:$0xff]
    %v153 = vld [vmem:[#allocation5 + $0x210] sm:$0xff]
    %v154 = vld [vmem:[#allocation5 + $0x218] sm:$0xff]
    %v155 = vld [vmem:[#allocation5 + $0x220] sm:$0xff]
    %v156 = vld [vmem:[#allocation5 + $0x228] sm:$0xff]
    %v157 = vld [vmem:[#allocation5 + $0x230] sm:$0xff]
    %v158 = vld [vmem:[#allocation5 + $0x238] sm:$0xff]
    %v159 = vld [vmem:[#allocation5 + $0x240] sm:$0x77]
    %v160 = vld [vmem:[#allocation5 + $0x248] sm:$0x77]
    %v161 = vld [vmem:[#allocation7] sm:$0xf]
    %v163 = vperm.slane %v161, 0
    %v164 = vperm.slane %v161, 1
    %v165 = vperm.slane %v161, 2
    %v166 = vperm.slane %v161, 3
    %v245 = vunpack.c.l.b16 %v87
    %v246 = vunpack.c.h.b16 %v87
    %v247 = vunpack.c.l.b16 %v88
    %v248 = vunpack.c.h.b16 %v88
    %v249 = vunpack.c.l.b16 %v89
    %v250 = vunpack.c.h.b16 %v89
    %v251 = vunpack.c.l.b16 %v90
    %v252 = vunpack.c.h.b16 %v90
    %v253 = vunpack.c.l.b16 %v91
    %v254 = vunpack.c.h.b16 %v91
    %v255 = vunpack.c.l.b16 %v92
    %v256 = vunpack.c.h.b16 %v92
    %v257 = vunpack.c.l.b16 %v93
    %v258 = vunpack.c.h.b16 %v93
    %v259 = vunpack.c.l.b16 %v94
    %v260 = vunpack.c.h.b16 %v94
    %v261 = vunpack.c.l.b16 %v95
    %v262 = vunpack.c.h.b16 %v95
    %v263 = vunpack.c.l.b16 %v96
    %v264 = vunpack.c.h.b16 %v96
    %v265 = vunpack.c.l.b16 %v97
    %v266 = vunpack.c.h.b16 %v97
    %v267 = vunpack.c.l.b16 %v98
    %v268 = vunpack.c.h.b16 %v98
    %v269 = vunpack.c.l.b16 %v99
    %v270 = vunpack.c.h.b16 %v99
    %v271 = vunpack.c.l.b16 %v100
    %v272 = vunpack.c.h.b16 %v100
    %v273 = vunpack.c.l.b16 %v101
    %v274 = vunpack.c.h.b16 %v101
    %v275 = vunpack.c.l.b16 %v102
    %v276 = vunpack.c.h.b16 %v102
    %v277 = vunpack.c.l.b16 %v103
    %v278 = vunpack.c.h.b16 %v103
    %v279 = vunpack.c.l.b16 %v104
    %v280 = vunpack.c.h.b16 %v104
    %v281 = vunpack.c.l.b16 %v105
    %v282 = vunpack.c.h.b16 %v105
    %v283 = vunpack.c.l.b16 %v106
    %v284 = vunpack.c.h.b16 %v106
    %v285 = vunpack.c.l.b16 %v107
    %v286 = vunpack.c.h.b16 %v107
    %v287 = vunpack.c.l.b16 %v108
    %v288 = vunpack.c.h.b16 %v108
    %v289 = vunpack.c.l.b16 %v109
    %v290 = vunpack.c.h.b16 %v109
    %v291 = vunpack.c.l.b16 %v110
    %v292 = vunpack.c.h.b16 %v110
    %v293 = vunpack.c.l.b16 %v111
    %v294 = vunpack.c.h.b16 %v111
    %v295 = vunpack.c.l.b16 %v112
    %v296 = vunpack.c.h.b16 %v112
    %v297 = vunpack.c.l.b16 %v113
    %v298 = vunpack.c.h.b16 %v113
    %v299 = vunpack.c.l.b16 %v114
    %v300 = vunpack.c.h.b16 %v114
    %v301 = vunpack.c.l.b16 %v115
    %v302 = vunpack.c.h.b16 %v115
    %v303 = vunpack.c.l.b16 %v116
    %v304 = vunpack.c.h.b16 %v116
    %v305 = vunpack.c.l.b16 %v117
    %v306 = vunpack.c.h.b16 %v117
    %v307 = vunpack.c.l.b16 %v118
    %v308 = vunpack.c.h.b16 %v118
    %v309 = vunpack.c.l.b16 %v119
    %v310 = vunpack.c.h.b16 %v119
    %v311 = vunpack.c.l.b16 %v120
    %v312 = vunpack.c.h.b16 %v120
    %v313 = vunpack.c.l.b16 %v121
    %v314 = vunpack.c.h.b16 %v121
    %v315 = vunpack.c.l.b16 %v122
    %v316 = vunpack.c.h.b16 %v122
    %v317 = vunpack.c.l.b16 %v123
    %v318 = vunpack.c.h.b16 %v123
    %v319 = vunpack.c.l.b16 %v124
    %v320 = vunpack.c.h.b16 %v124
    %v321 = vunpack.c.l.b16 %v125
    %v322 = vunpack.c.h.b16 %v125
    %v323 = vunpack.c.l.b16 %v126
    %v324 = vunpack.c.h.b16 %v126
    %v325 = vunpack.c.l.b16 %v127
    %v326 = vunpack.c.h.b16 %v127
    %v327 = vunpack.c.l.b16 %v128
    %v328 = vunpack.c.h.b16 %v128
    %v329 = vunpack.c.l.b16 %v129
    %v330 = vunpack.c.h.b16 %v129
    %v331 = vunpack.c.l.b16 %v130
    %v332 = vunpack.c.h.b16 %v130
    %v333 = vunpack.c.l.b16 %v131
    %v334 = vunpack.c.h.b16 %v131
    %v335 = vunpack.c.l.b16 %v132
    %v336 = vunpack.c.h.b16 %v132
    %v337 = vunpack.c.l.b16 %v133
    %v338 = vunpack.c.h.b16 %v133
    %v339 = vunpack.c.l.b16 %v134
    %v340 = vunpack.c.h.b16 %v134
    %v341 = vunpack.c.l.b16 %v135
    %v342 = vunpack.c.h.b16 %v135
    %v343 = vunpack.c.l.b16 %v136
    %v344 = vunpack.c.h.b16 %v136
    %v345 = vunpack.c.l.b16 %v137
    %v346 = vunpack.c.h.b16 %v137
    %v347 = vunpack.c.l.b16 %v138
    %v348 = vunpack.c.h.b16 %v138
    %v349 = vunpack.c.l.b16 %v139
    %v350 = vunpack.c.h.b16 %v139
    %v351 = vunpack.c.l.b16 %v140
    %v352 = vunpack.c.h.b16 %v140
    %v353 = vunpack.c.l.b16 %v141
    %v354 = vunpack.c.h.b16 %v141
    %v355 = vunpack.c.l.b16 %v142
    %v356 = vunpack.c.h.b16 %v142
    %v357 = vunpack.c.l.b16 %v143
    %v358 = vunpack.c.h.b16 %v143
    %v359 = vunpack.c.l.b16 %v144
    %v360 = vunpack.c.h.b16 %v144
    %v361 = vunpack.c.l.b16 %v145
    %v362 = vunpack.c.h.b16 %v145
    %v363 = vunpack.c.l.b16 %v146
    %v364 = vunpack.c.h.b16 %v146
    %v365 = vunpack.c.l.b16 %v147
    %v366 = vunpack.c.h.b16 %v147
    %v367 = vunpack.c.l.b16 %v148
    %v368 = vunpack.c.h.b16 %v148
    %v369 = vunpack.c.l.b16 %v149
    %v370 = vunpack.c.h.b16 %v149
    %v371 = vunpack.c.l.b16 %v150
    %v372 = vunpack.c.h.b16 %v150
    %v373 = vunpack.c.l.b16 %v151
    %v374 = vunpack.c.h.b16 %v151
    %v375 = vunpack.c.l.b16 %v152
    %v376 = vunpack.c.h.b16 %v152
    %v377 = vunpack.c.l.b16 %v153
    %v378 = vunpack.c.h.b16 %v153
    %v379 = vunpack.c.l.b16 %v154
    %v380 = vunpack.c.h.b16 %v154
    %v381 = vunpack.c.l.b16 %v155
    %v382 = vunpack.c.h.b16 %v155
    %v383 = vunpack.c.l.b16 %v156
    %v384 = vunpack.c.h.b16 %v156
    %v385 = vunpack.c.l.b16 %v157
    %v386 = vunpack.c.h.b16 %v157
    %v387 = vunpack.c.l.b16 %v158
    %v388 = vunpack.c.h.b16 %v158
    %v389 = vunpack.c.l.b16 %v159
    %v390 = vunpack.c.h.b16 %v159
    %v391 = vunpack.c.l.b16 %v160
    %v392 = vunpack.c.h.b16 %v160
    %v393 = vpack.c.b16 %v249, %v245
    %v394 = vpack.c.b16 %v250, %v246
    %v395 = vpack.c.b16 %v251, %v247
    %v396 = vpack.c.b16 %v252, %v248
    %v397 = vpack.c.b16 %v257, %v253
    %v398 = vpack.c.b16 %v258, %v254
    %v399 = vpack.c.b16 %v259, %v255
    %v400 = vpack.c.b16 %v260, %v256
    %v401 = vpack.c.b16 %v265, %v261
    %v402 = vpack.c.b16 %v266, %v262
    %v403 = vpack.c.b16 %v267, %v263
    %v404 = vpack.c.b16 %v268, %v264
    %v405 = vpack.c.b16 %v273, %v269
    %v406 = vpack.c.b16 %v274, %v270
    %v407 = vpack.c.b16 %v275, %v271
    %v408 = vpack.c.b16 %v276, %v272
    %v409 = vpack.c.b16 %v281, %v277
    %v410 = vpack.c.b16 %v282, %v278
    %v411 = vpack.c.b16 %v283, %v279
    %v412 = vpack.c.b16 %v284, %v280
    %v413 = vpack.c.b16 %v289, %v285
    %v414 = vpack.c.b16 %v290, %v286
    %v415 = vpack.c.b16 %v291, %v287
    %v416 = vpack.c.b16 %v292, %v288
    %v417 = vpack.c.b16 %v297, %v293
    %v418 = vpack.c.b16 %v298, %v294
    %v419 = vpack.c.b16 %v299, %v295
    %v420 = vpack.c.b16 %v300, %v296
    %v421 = vpack.c.b16 %v305, %v301
    %v422 = vpack.c.b16 %v306, %v302
    %v423 = vpack.c.b16 %v307, %v303
    %v424 = vpack.c.b16 %v308, %v304
    %v425 = vpack.c.b16 %v313, %v309
    %v426 = vpack.c.b16 %v314, %v310
    %v427 = vpack.c.b16 %v315, %v311
    %v428 = vpack.c.b16 %v316, %v312
    %v429 = vpack.c.b16 %v321, %v317
    %v430 = vpack.c.b16 %v322, %v318
    %v431 = vpack.c.b16 %v323, %v319
    %v432 = vpack.c.b16 %v324, %v320
    %v433 = vpack.c.b16 %v329, %v325
    %v434 = vpack.c.b16 %v330, %v326
    %v435 = vpack.c.b16 %v331, %v327
    %v436 = vpack.c.b16 %v332, %v328
    %v437 = vpack.c.b16 %v337, %v333
    %v438 = vpack.c.b16 %v338, %v334
    %v439 = vpack.c.b16 %v339, %v335
    %v440 = vpack.c.b16 %v340, %v336
    %v441 = vpack.c.b16 %v345, %v341
    %v442 = vpack.c.b16 %v346, %v342
    %v443 = vpack.c.b16 %v347, %v343
    %v444 = vpack.c.b16 %v348, %v344
    %v445 = vpack.c.b16 %v353, %v349
    %v446 = vpack.c.b16 %v354, %v350
    %v447 = vpack.c.b16 %v355, %v351
    %v448 = vpack.c.b16 %v356, %v352
    %v449 = vpack.c.b16 %v361, %v357
    %v450 = vpack.c.b16 %v362, %v358
    %v451 = vpack.c.b16 %v363, %v359
    %v452 = vpack.c.b16 %v364, %v360
    %v453 = vpack.c.b16 %v369, %v365
    %v454 = vpack.c.b16 %v370, %v366
    %v455 = vpack.c.b16 %v371, %v367
    %v456 = vpack.c.b16 %v372, %v368
    %v457 = vpack.c.b16 %v377, %v373
    %v458 = vpack.c.b16 %v378, %v374
    %v459 = vpack.c.b16 %v379, %v375
    %v460 = vpack.c.b16 %v380, %v376
    %v461 = vpack.c.b16 %v385, %v381
    %v462 = vpack.c.b16 %v386, %v382
    %v463 = vpack.c.b16 %v387, %v383
    %v464 = vpack.c.b16 %v388, %v384
    %v465 = vpack.c.b16 %v389, %v389
    %v466 = vpack.c.b16 %v390, %v390
    %v467 = vpack.c.b16 %v391, %v391
    %v468 = vpack.c.b16 %v392, %v392
    %vm541 = vcmask 310272
    %v543 = vsel %vm541, %v86, 0
    %vm545 = vcmask 1042432
    %v547 = vsel %vm545, %v465, 0
    %v550 = vsel %vm545, %v466, 0
    %v553 = vsel %vm545, %v467, 0
    %v556 = vsel %vm545, %v468, 0
    %558 = vmatpush.bf16.msra.mxu0 %v421
    %559 = vmatpush.bf16.msra.mxu0 %v417
    %560 = vmatpush.bf16.msra.mxu0 %v413
    %561 = vmatpush.bf16.msra.mxu0 %v409
    %562 = vmatpush.bf16.msra.mxu0 %v405
    %563 = vmatpush.bf16.msra.mxu0 %v401
    %564 = vmatpush.bf16.msra.mxu0 %v397
    %565 = vmatpush.bf16.msra.mxu0 %v393
    %566 = vmatmul.bf16.gmra.mxu0 %v84
    %v567 = vpop.f32.mrf.mxu0
    %v568 = vadd.f32 %v163, %v567
    %v569 = vpop.f32.mrf.mxu0
    %570 = vdwg.mxu0
    %571 = vmatpush.bf16.msra.mxu0 %v453
    %572 = vmatpush.bf16.msra.mxu0 %v449
    %573 = vmatpush.bf16.msra.mxu0 %v445
    %574 = vmatpush.bf16.msra.mxu0 %v441
    %575 = vmatpush.bf16.msra.mxu0 %v437
    %576 = vmatpush.bf16.msra.mxu0 %v433
    %577 = vmatpush.bf16.msra.mxu0 %v429
    %578 = vmatpush.bf16.msra.mxu0 %v425
    %579 = vmatmul.bf16.gmra.mxu0 %v85
    %v580 = vpop.f32.mrf.mxu0
    %v581 = vadd.f32 %v568, %v580
    %v582 = vpop.f32.mrf.mxu0
    %583 = vdwg.mxu0
    %584 = vmatpush.bf16.msra.mxu0 0
    %585 = vmatpush.bf16.msra.mxu0 0
    %586 = vmatpush.bf16.msra.mxu0 0
    %587 = vmatpush.bf16.msra.mxu0 0
    %588 = vmatpush.bf16.msra.mxu0 0
    %589 = vmatpush.bf16.msra.mxu0 %v547
    %590 = vmatpush.bf16.msra.mxu0 %v461
    %591 = vmatpush.bf16.msra.mxu0 %v457
    %592 = vmatmul.bf16.gmra.mxu0 %v543
    %v593 = vpop.f32.mrf.mxu0
    %v594 = vadd.f32 %v581, %v593
    %v595 = vpop.f32.mrf.mxu0
    %596 = vdwg.mxu0
    %597 = vmatpush.bf16.msra.mxu0 %v422
    %598 = vmatpush.bf16.msra.mxu0 %v418
    %599 = vmatpush.bf16.msra.mxu0 %v414
    %600 = vmatpush.bf16.msra.mxu0 %v410
    %601 = vmatpush.bf16.msra.mxu0 %v406
    %602 = vmatpush.bf16.msra.mxu0 %v402
    %603 = vmatpush.bf16.msra.mxu0 %v398
    %604 = vmatpush.bf16.msra.mxu0 %v394
    %605 = vmatmul.bf16.gmra.mxu0 %v84
    %v606 = vpop.f32.mrf.mxu0
    %v607 = vadd.f32 %v164, %v606
    %v608 = vpop.f32.mrf.mxu0
    %609 = vdwg.mxu0
    %610 = vmatpush.bf16.msra.mxu0 %v454
    %611 = vmatpush.bf16.msra.mxu0 %v450
    %612 = vmatpush.bf16.msra.mxu0 %v446
    %613 = vmatpush.bf16.msra.mxu0 %v442
    %614 = vmatpush.bf16.msra.mxu0 %v438
    %615 = vmatpush.bf16.msra.mxu0 %v434
    %616 = vmatpush.bf16.msra.mxu0 %v430
    %617 = vmatpush.bf16.msra.mxu0 %v426
    %618 = vmatmul.bf16.gmra.mxu0 %v85
    %v619 = vpop.f32.mrf.mxu0
    %v620 = vadd.f32 %v607, %v619
    %v621 = vpop.f32.mrf.mxu0
    %622 = vdwg.mxu0
    %623 = vmatpush.bf16.msra.mxu0 0
    %624 = vmatpush.bf16.msra.mxu0 0
    %625 = vmatpush.bf16.msra.mxu0 0
    %626 = vmatpush.bf16.msra.mxu0 0
    %627 = vmatpush.bf16.msra.mxu0 0
    %628 = vmatpush.bf16.msra.mxu0 %v550
    %629 = vmatpush.bf16.msra.mxu0 %v462
    %630 = vmatpush.bf16.msra.mxu0 %v458
    %631 = vmatmul.bf16.gmra.mxu0 %v543
    %v632 = vpop.f32.mrf.mxu0
    %v633 = vadd.f32 %v620, %v632
    %v634 = vpop.f32.mrf.mxu0
    %635 = vdwg.mxu0
    %636 = vmatpush.bf16.msra.mxu0 %v423
    %637 = vmatpush.bf16.msra.mxu0 %v419
    %638 = vmatpush.bf16.msra.mxu0 %v415
    %639 = vmatpush.bf16.msra.mxu0 %v411
    %640 = vmatpush.bf16.msra.mxu0 %v407
    %641 = vmatpush.bf16.msra.mxu0 %v403
    %642 = vmatpush.bf16.msra.mxu0 %v399
    %643 = vmatpush.bf16.msra.mxu0 %v395
    %644 = vmatmul.bf16.gmra.mxu0 %v84
    %v645 = vpop.f32.mrf.mxu0
    %v646 = vadd.f32 %v165, %v645
    %v647 = vpop.f32.mrf.mxu0
    %648 = vdwg.mxu0
    %649 = vmatpush.bf16.msra.mxu0 %v455
    %650 = vmatpush.bf16.msra.mxu0 %v451
    %651 = vmatpush.bf16.msra.mxu0 %v447
    %652 = vmatpush.bf16.msra.mxu0 %v443
    %653 = vmatpush.bf16.msra.mxu0 %v439
    %654 = vmatpush.bf16.msra.mxu0 %v435
    %655 = vmatpush.bf16.msra.mxu0 %v431
    %656 = vmatpush.bf16.msra.mxu0 %v427
    %657 = vmatmul.bf16.gmra.mxu0 %v85
    %v658 = vpop.f32.mrf.mxu0
    %v659 = vadd.f32 %v646, %v658
    %v660 = vpop.f32.mrf.mxu0
    %661 = vdwg.mxu0
    %662 = vmatpush.bf16.msra.mxu0 0
    %663 = vmatpush.bf16.msra.mxu0 0
    %664 = vmatpush.bf16.msra.mxu0 0
    %665 = vmatpush.bf16.msra.mxu0 0
    %666 = vmatpush.bf16.msra.mxu0 0
    %667 = vmatpush.bf16.msra.mxu0 %v553
    %668 = vmatpush.bf16.msra.mxu0 %v463
    %669 = vmatpush.bf16.msra.mxu0 %v459
    %670 = vmatmul.bf16.gmra.mxu0 %v543
    %v671 = vpop.f32.mrf.mxu0
    %v672 = vadd.f32 %v659, %v671
    %v673 = vpop.f32.mrf.mxu0
    %674 = vdwg.mxu0
    %675 = vmatpush.bf16.msra.mxu0 %v424
    %676 = vmatpush.bf16.msra.mxu0 %v420
    %677 = vmatpush.bf16.msra.mxu0 %v416
    %678 = vmatpush.bf16.msra.mxu0 %v412
    %679 = vmatpush.bf16.msra.mxu0 %v408
    %680 = vmatpush.bf16.msra.mxu0 %v404
    %681 = vmatpush.bf16.msra.mxu0 %v400
    %682 = vmatpush.bf16.msra.mxu0 %v396
    %683 = vmatmul.bf16.gmra.mxu0 %v84
    %v684 = vpop.f32.mrf.mxu0
    %v685 = vadd.f32 %v166, %v684
    %v686 = vpop.f32.mrf.mxu0
    %687 = vdwg.mxu0
    %688 = vmatpush.bf16.msra.mxu0 %v456
    %689 = vmatpush.bf16.msra.mxu0 %v452
    %690 = vmatpush.bf16.msra.mxu0 %v448
    %691 = vmatpush.bf16.msra.mxu0 %v444
    %692 = vmatpush.bf16.msra.mxu0 %v440
    %693 = vmatpush.bf16.msra.mxu0 %v436
    %694 = vmatpush.bf16.msra.mxu0 %v432
    %695 = vmatpush.bf16.msra.mxu0 %v428
    %696 = vmatmul.bf16.gmra.mxu0 %v85
    %v697 = vpop.f32.mrf.mxu0
    %v698 = vadd.f32 %v685, %v697
    %v699 = vpop.f32.mrf.mxu0
    %700 = vdwg.mxu0
    %701 = vmatpush.bf16.msra.mxu0 0
    %702 = vmatpush.bf16.msra.mxu0 0
    %703 = vmatpush.bf16.msra.mxu0 0
    %704 = vmatpush.bf16.msra.mxu0 0
    %705 = vmatpush.bf16.msra.mxu0 0
    %706 = vmatpush.bf16.msra.mxu0 %v556
    %707 = vmatpush.bf16.msra.mxu0 %v464
    %708 = vmatpush.bf16.msra.mxu0 %v460
    %709 = vmatmul.bf16.gmra.mxu0 %v543
    %v710 = vpop.f32.mrf.mxu0
    %v711 = vadd.f32 %v698, %v710
    %v712 = vpop.f32.mrf.mxu0
    %713 = vdwg.mxu0
    %v714 = vmax.f32 %v594, 0.0
    %v715 = vmax.f32 %v633, 0.0
    %v716 = vmax.f32 %v672, 0.0
    %v717 = vmax.f32 %v711, 0.0
    %v718 = vpack.c.bf16 %v714, %v714
    %v719 = vpack.c.bf16 %v715, %v715
    %v720 = vpack.c.bf16 %v716, %v716
    %v721 = vpack.c.bf16 %v717, %v717
    %v722 = vld [vmem:[#allocation8] sm:$0xf]
    %v723 = vld [vmem:[#allocation8 + $0x4] sm:$0xf]
    %v724 = vld [vmem:[#allocation8 + $0x8] sm:$0xf]
    %v725 = vld [vmem:[#allocation8 + $0xc] sm:$0xf]
    %v726 = vld [vmem:[#allocation8 + $0x10] sm:$0xf]
    %v727 = vld [vmem:[#allocation8 + $0x14] sm:$0xf]
    %v728 = vld [vmem:[#allocation8 + $0x18] sm:$0xf]
    %v729 = vld [vmem:[#allocation8 + $0x1c] sm:$0xf]
    %v730 = vld [vmem:[#allocation8 + $0x20] sm:$0xf]
    %v731 = vld [vmem:[#allocation8 + $0x24] sm:$0xf]
    %v732 = vld [vmem:[#allocation8 + $0x28] sm:$0xf]
    %v733 = vld [vmem:[#allocation8 + $0x2c] sm:$0xf]
    %v734 = vld [vmem:[#allocation8 + $0x30] sm:$0xf]
    %v735 = vld [vmem:[#allocation8 + $0x34] sm:$0xf]
    %v736 = vld [vmem:[#allocation8 + $0x38] sm:$0xf]
    %v737 = vld [vmem:[#allocation8 + $0x3c] sm:$0xf]
    %v738 = vld [vmem:[#allocation8 + $0x40] sm:$0xf]
    %v739 = vld [vmem:[#allocation8 + $0x44] sm:$0xf]
    %v740 = vld [vmem:[#allocation8 + $0x48] sm:$0xf]
    %v741 = vld [vmem:[#allocation8 + $0x4c] sm:$0xf]
    %v742 = vld [vmem:[#allocation8 + $0x50] sm:$0xf]
    %v743 = vld [vmem:[#allocation8 + $0x54] sm:$0xf]
    %v744 = vld [vmem:[#allocation8 + $0x58] sm:$0xf]
    %v745 = vld [vmem:[#allocation8 + $0x5c] sm:$0xf]
    %v746 = vld [vmem:[#allocation8 + $0x60] sm:$0xf]
    %v747 = vld [vmem:[#allocation8 + $0x64] sm:$0xf]
    %v748 = vld [vmem:[#allocation8 + $0x68] sm:$0xf]
    %v749 = vld [vmem:[#allocation8 + $0x6c] sm:$0xf]
    %v750 = vld [vmem:[#allocation8 + $0x70] sm:$0xf]
    %v751 = vld [vmem:[#allocation8 + $0x74] sm:$0xf]
    %v752 = vld [vmem:[#allocation8 + $0x78] sm:$0xf]
    %v753 = vld [vmem:[#allocation8 + $0x7c] sm:$0xf]
    %v754 = vld [vmem:[#allocation8 + $0x80] sm:$0xf]
    %v755 = vld [vmem:[#allocation8 + $0x84] sm:$0xf]
    %v756 = vld [vmem:[#allocation8 + $0x88] sm:$0xf]
    %v757 = vld [vmem:[#allocation8 + $0x8c] sm:$0xf]
    %v758 = vld [vmem:[#allocation8 + $0x90] sm:$0xf]
    %v759 = vld [vmem:[#allocation8 + $0x94] sm:$0xf]
    %v760 = vld [vmem:[#allocation8 + $0x98] sm:$0xf]
    %v761 = vld [vmem:[#allocation8 + $0x9c] sm:$0xf]
    %v762 = vld [vmem:[#allocation8 + $0xa0] sm:$0xf]
    %v763 = vld [vmem:[#allocation8 + $0xa4] sm:$0xf]
    %v764 = vld [vmem:[#allocation8 + $0xa8] sm:$0xf]
    %v765 = vld [vmem:[#allocation8 + $0xac] sm:$0xf]
    %v766 = vld [vmem:[#allocation8 + $0xb0] sm:$0xf]
    %v767 = vld [vmem:[#allocation8 + $0xb4] sm:$0xf]
    %v768 = vld [vmem:[#allocation8 + $0xb8] sm:$0xf]
    %v769 = vld [vmem:[#allocation8 + $0xbc] sm:$0xf]
    %v770 = vld [vmem:[#allocation8 + $0xc0] sm:$0xf]
    %v771 = vld [vmem:[#allocation8 + $0xc4] sm:$0xf]
    %v772 = vld [vmem:[#allocation8 + $0xc8] sm:$0xf]
    %v773 = vld [vmem:[#allocation8 + $0xcc] sm:$0xf]
    %v774 = vld [vmem:[#allocation8 + $0xd0] sm:$0xf]
    %v775 = vld [vmem:[#allocation8 + $0xd4] sm:$0xf]
    %v776 = vld [vmem:[#allocation8 + $0xd8] sm:$0xf]
    %v777 = vld [vmem:[#allocation8 + $0xdc] sm:$0xf]
    %v778 = vld [vmem:[#allocation8 + $0xe0] sm:$0xf]
    %v779 = vld [vmem:[#allocation8 + $0xe4] sm:$0xf]
    %v780 = vld [vmem:[#allocation8 + $0xe8] sm:$0xf]
    %v781 = vld [vmem:[#allocation8 + $0xec] sm:$0xf]
    %v782 = vld [vmem:[#allocation8 + $0xf0] sm:$0xf]
    %v783 = vld [vmem:[#allocation8 + $0xf4] sm:$0xf]
    %v784 = vld [vmem:[#allocation8 + $0xf8] sm:$0xf]
    %v785 = vld [vmem:[#allocation8 + $0xfc] sm:$0xf]
    %v786 = vld [vmem:[%s4] sm:$0x1]
    %v788 = vperm.slane %v786, 0
    %v854 = vunpack.c.l.b16 %v722
    %v855 = vunpack.c.l.b16 %v723
    %v856 = vunpack.c.l.b16 %v724
    %v857 = vunpack.c.l.b16 %v725
    %v858 = vunpack.c.l.b16 %v726
    %v859 = vunpack.c.l.b16 %v727
    %v860 = vunpack.c.l.b16 %v728
    %v861 = vunpack.c.l.b16 %v729
    %v862 = vunpack.c.l.b16 %v730
    %v863 = vunpack.c.l.b16 %v731
    %v864 = vunpack.c.l.b16 %v732
    %v865 = vunpack.c.l.b16 %v733
    %v866 = vunpack.c.l.b16 %v734
    %v867 = vunpack.c.l.b16 %v735
    %v868 = vunpack.c.l.b16 %v736
    %v869 = vunpack.c.l.b16 %v737
    %v870 = vunpack.c.l.b16 %v738
    %v871 = vunpack.c.l.b16 %v739
    %v872 = vunpack.c.l.b16 %v740
    %v873 = vunpack.c.l.b16 %v741
    %v874 = vunpack.c.l.b16 %v742
    %v875 = vunpack.c.l.b16 %v743
    %v876 = vunpack.c.l.b16 %v744
    %v877 = vunpack.c.l.b16 %v745
    %v878 = vunpack.c.l.b16 %v746
    %v879 = vunpack.c.l.b16 %v747
    %v880 = vunpack.c.l.b16 %v748
    %v881 = vunpack.c.l.b16 %v749
    %v882 = vunpack.c.l.b16 %v750
    %v883 = vunpack.c.l.b16 %v751
    %v884 = vunpack.c.l.b16 %v752
    %v885 = vunpack.c.l.b16 %v753
    %v886 = vunpack.c.l.b16 %v754
    %v887 = vunpack.c.l.b16 %v755
    %v888 = vunpack.c.l.b16 %v756
    %v889 = vunpack.c.l.b16 %v757
    %v890 = vunpack.c.l.b16 %v758
    %v891 = vunpack.c.l.b16 %v759
    %v892 = vunpack.c.l.b16 %v760
    %v893 = vunpack.c.l.b16 %v761
    %v894 = vunpack.c.l.b16 %v762
    %v895 = vunpack.c.l.b16 %v763
    %v896 = vunpack.c.l.b16 %v764
    %v897 = vunpack.c.l.b16 %v765
    %v898 = vunpack.c.l.b16 %v766
    %v899 = vunpack.c.l.b16 %v767
    %v900 = vunpack.c.l.b16 %v768
    %v901 = vunpack.c.l.b16 %v769
    %v902 = vunpack.c.l.b16 %v770
    %v903 = vunpack.c.l.b16 %v771
    %v904 = vunpack.c.l.b16 %v772
    %v905 = vunpack.c.l.b16 %v773
    %v906 = vunpack.c.l.b16 %v774
    %v907 = vunpack.c.l.b16 %v775
    %v908 = vunpack.c.l.b16 %v776
    %v909 = vunpack.c.l.b16 %v777
    %v910 = vunpack.c.l.b16 %v778
    %v911 = vunpack.c.l.b16 %v779
    %v912 = vunpack.c.l.b16 %v780
    %v913 = vunpack.c.l.b16 %v781
    %v914 = vunpack.c.l.b16 %v782
    %v915 = vunpack.c.l.b16 %v783
    %v916 = vunpack.c.l.b16 %v784
    %v917 = vunpack.c.l.b16 %v785
    %v918 = vpack.c.b16 %v855, %v854
    %v919 = vpack.c.b16 %v857, %v856
    %v920 = vpack.c.b16 %v859, %v858
    %v921 = vpack.c.b16 %v861, %v860
    %v922 = vpack.c.b16 %v863, %v862
    %v923 = vpack.c.b16 %v865, %v864
    %v924 = vpack.c.b16 %v867, %v866
    %v925 = vpack.c.b16 %v869, %v868
    %v926 = vpack.c.b16 %v871, %v870
    %v927 = vpack.c.b16 %v873, %v872
    %v928 = vpack.c.b16 %v875, %v874
    %v929 = vpack.c.b16 %v877, %v876
    %v930 = vpack.c.b16 %v879, %v878
    %v931 = vpack.c.b16 %v881, %v880
    %v932 = vpack.c.b16 %v883, %v882
    %v933 = vpack.c.b16 %v885, %v884
    %v934 = vpack.c.b16 %v887, %v886
    %v935 = vpack.c.b16 %v889, %v888
    %v936 = vpack.c.b16 %v891, %v890
    %v937 = vpack.c.b16 %v893, %v892
    %v938 = vpack.c.b16 %v895, %v894
    %v939 = vpack.c.b16 %v897, %v896
    %v940 = vpack.c.b16 %v899, %v898
    %v941 = vpack.c.b16 %v901, %v900
    %v942 = vpack.c.b16 %v903, %v902
    %v943 = vpack.c.b16 %v905, %v904
    %v944 = vpack.c.b16 %v907, %v906
    %v945 = vpack.c.b16 %v909, %v908
    %v946 = vpack.c.b16 %v911, %v910
    %v947 = vpack.c.b16 %v913, %v912
    %v948 = vpack.c.b16 %v915, %v914
    %v949 = vpack.c.b16 %v917, %v916
    %982 = vmatpush.bf16.msra.mxu0 %v925
    %983 = vmatpush.bf16.msra.mxu0 %v924
    %984 = vmatpush.bf16.msra.mxu0 %v923
    %985 = vmatpush.bf16.msra.mxu0 %v922
    %986 = vmatpush.bf16.msra.mxu0 %v921
    %987 = vmatpush.bf16.msra.mxu0 %v920
    %988 = vmatpush.bf16.msra.mxu0 %v919
    %989 = vmatpush.bf16.msra.mxu0 %v918
    %990 = vmatmul.bf16.gmra.mxu0 %v718
    %v991 = vpop.f32.mrf.mxu0
    %v992 = vadd.f32 %v788, %v991
    %v993 = vpop.f32.mrf.mxu0
    %994 = vdwg.mxu0
    %995 = vmatpush.bf16.msra.mxu0 %v933
    %996 = vmatpush.bf16.msra.mxu0 %v932
    %997 = vmatpush.bf16.msra.mxu0 %v931
    %998 = vmatpush.bf16.msra.mxu0 %v930
    %999 = vmatpush.bf16.msra.mxu0 %v929
    %1000 = vmatpush.bf16.msra.mxu0 %v928
    %1001 = vmatpush.bf16.msra.mxu0 %v927
    %1002 = vmatpush.bf16.msra.mxu0 %v926
    %1003 = vmatmul.bf16.gmra.mxu0 %v719
    %v1004 = vpop.f32.mrf.mxu0
    %v1005 = vadd.f32 %v992, %v1004
    %v1006 = vpop.f32.mrf.mxu0
    %1007 = vdwg.mxu0
    %1008 = vmatpush.bf16.msra.mxu0 %v941
    %1009 = vmatpush.bf16.msra.mxu0 %v940
    %1010 = vmatpush.bf16.msra.mxu0 %v939
    %1011 = vmatpush.bf16.msra.mxu0 %v938
    %1012 = vmatpush.bf16.msra.mxu0 %v937
    %1013 = vmatpush.bf16.msra.mxu0 %v936
    %1014 = vmatpush.bf16.msra.mxu0 %v935
    %1015 = vmatpush.bf16.msra.mxu0 %v934
    %1016 = vmatmul.bf16.gmra.mxu0 %v720
    %v1017 = vpop.f32.mrf.mxu0
    %v1018 = vadd.f32 %v1005, %v1017
    %v1019 = vpop.f32.mrf.mxu0
    %1020 = vdwg.mxu0
    %1021 = vmatpush.bf16.msra.mxu0 %v949
    %1022 = vmatpush.bf16.msra.mxu0 %v948
    %1023 = vmatpush.bf16.msra.mxu0 %v947
    %1024 = vmatpush.bf16.msra.mxu0 %v946
    %1025 = vmatpush.bf16.msra.mxu0 %v945
    %1026 = vmatpush.bf16.msra.mxu0 %v944
    %1027 = vmatpush.bf16.msra.mxu0 %v943
    %1028 = vmatpush.bf16.msra.mxu0 %v942
    %1029 = vmatmul.bf16.gmra.mxu0 %v721
    %v1030 = vpop.f32.mrf.mxu0
    %v1031 = vadd.f32 %v1018, %v1030
    %v1032 = vpop.f32.mrf.mxu0
    %1033 = vdwg.mxu0
    %1034 = vst [vmem:[#allocation10] sm:$0xff] %v1031
    // Predicated region
    $region38: #{neural_network_forward.1} parent=1 // pred_check
      _
    $region39: #{neural_network_forward.1} parent=1 // pred_check_branch
      %1036 = sbr.rel (0) target = $region41
    $region40: #{neural_network_forward.1} parent=1 // pred_region
      %1038 = vsyncadd [#allocation4], 0
      %s1040 = sshll.u32 [#allocation10], 4
      %s1041 = int_to_ptr.vmem [resolvable:$true] %s1040
      %s1042 = sshll.u32 %s5, 4
      %s1043 = int_to_ptr.hbm [resolvable:$true] %s1042
      %1045 = dma.vmem_to_hbm [thread:$0]  %s1041, 128, %s1043, [#allocation4]
    $region41: #{neural_network_forward.1} parent=1 // pred_fallthru
      _
    // Predicated region
    $region42: #{neural_network_forward.1} parent=1 // pred_check
      _
    $region43: #{neural_network_forward.1} parent=1 // pred_check_branch
      %1047 = sbr.rel (0) target = $region45
    $region44: #{neural_network_forward.1} parent=1 // pred_region
      %1049 = dma.done [#allocation4], 128
    $region45: #{neural_network_forward.1} parent=1 // pred_fallthru
      _
    %1050 = vsyncpa [#allocation3], 1
    %1051 = vsyncpa [#allocation6], 1
    %1052 = vsyncpa [#allocation9], 1
    %1053 = vsyncpa [#allocation4], 1

</llo_original>
